<compile_context>
chip_gen: v5e
topology: v5e:2x2
jax: 0.10.0
libtpu: 0.0.40
codegen_flags: <defaults>
</compile_context>

<pallas_src>
import functools

import jax
import jax.numpy as jnp
from jax.experimental import pallas as pl
from jax.experimental.pallas import tpu as pltpu

EPS = 1e-5
IN_FEATURES = 26        # logical BatchNorm / FC0 input width
HIDDEN = 256
OUT_FEATURES = 9        # logical FC2 output width
IN_PAD = 128            # lane-aligned K for FC0 (zero-padded)
OUT_PAD = 128           # lane-dense output width (unmasked vst), sliced to 9 outside
INV_SQRT2 = 0.7071067811865476
NEG_INF = -1e30


def _round_up(v, m):
    return (v + m - 1) // m * m


# ---------------------------------------------------------------------------
# Kernel 1: full-batch BatchNorm statistics -> folded per-feature scale/shift.
# Zero-padded rows contribute nothing to the sums; divide by the true batch
# size (static at trace time, baked in via functools.partial).
# ---------------------------------------------------------------------------
def bn_stats_kernel(x_ref, gamma_ref, beta_ref, scale_ref, shift_ref,
                    sum_sc, sq_sc, *, inv_n):
    i = pl.program_id(0)

    @pl.when(i == 0)
    def _():
        sum_sc[...] = jnp.zeros_like(sum_sc)
        sq_sc[...] = jnp.zeros_like(sq_sc)

    x = x_ref[...]                                       # (BLK, IN_PAD) f32
    sum_sc[...] += jnp.sum(x, axis=0, keepdims=True)     # one pass: sum and sum(x^2)
    sq_sc[...] += jnp.sum(x * x, axis=0, keepdims=True)

    @pl.when(i == pl.num_programs(0) - 1)
    def _():
        mean = sum_sc[...] * inv_n
        var = sq_sc[...] * inv_n - mean * mean           # biased batch variance
        s = jax.lax.rsqrt(var + EPS) * gamma_ref[...]
        scale_ref[...] = s
        shift_ref[...] = beta_ref[...] - mean * s
    # TODO(synk): running_mean / running_var buffer updates (PyTorch momentum
    # bookkeeping) are not emitted; this kernel reproduces the training-mode forward.


# ---------------------------------------------------------------------------
# Kernel 2: fused BN-apply + FC0 + GELU(erf) + FC2 + softmax, row-block parallel.
# ---------------------------------------------------------------------------
def mlp_kernel(scale_ref, shift_ref, x_ref, w0_ref, b0_ref, w2_ref, b2_ref, o_ref):
    # BatchNorm folded into a single FMA over the (BLK, IN_PAD) tile.
    xn = x_ref[...] * scale_ref[...] + shift_ref[...]

    # FC0: bf16 MXU inputs, f32 accumulation; exact-erf GELU (parity with nn.GELU()).
    h = jnp.dot(xn.astype(jnp.bfloat16), w0_ref[...],
                preferred_element_type=jnp.float32) + b0_ref[...]
    h = 0.5 * h * (1.0 + jax.lax.erf(h * INV_SQRT2))

    # FC2 into a lane-dense 128-wide tile (padded weight columns are zero).
    logits = jnp.dot(h.astype(jnp.bfloat16), w2_ref[...],
                     preferred_element_type=jnp.float32) + b2_ref[...]

    # Mask padded output lanes so softmax normalizes over the 9 real classes.
    lane = jax.lax.broadcasted_iota(jnp.int32, logits.shape, 1)
    logits = jnp.where(lane < OUT_FEATURES, logits, NEG_INF)

    m = jnp.max(logits, axis=-1, keepdims=True)
    e = jnp.exp(logits - m)
    denom = jnp.sum(e, axis=-1, keepdims=True)
    o_ref[...] = e * pl.reciprocal(denom, approx=True)   # EUP vrcp slot


# ---------------------------------------------------------------------------
# Wrapper
# ---------------------------------------------------------------------------
def net_forward(x, gamma_p, beta_p, w0_p, b0, w2_p, b2_p):
    n = x.shape[0]
    blk = min(512, _round_up(n, 8))                      # row block (sublane-aligned)
    n_pad = _round_up(n, blk)
    n_blocks = n_pad // blk

    # Zero-pad batch rows and feature columns to aligned shapes.
    x_p = jnp.zeros((n_pad, IN_PAD), jnp.float32).at[:n, :IN_FEATURES].set(x)

    # Pass 1: full-batch BN stats -> folded (1, IN_PAD) scale / shift.
    scale, shift = pl.pallas_call(
        functools.partial(bn_stats_kernel, inv_n=1.0 / n),
        out_shape=(jax.ShapeDtypeStruct((1, IN_PAD), jnp.float32),
                   jax.ShapeDtypeStruct((1, IN_PAD), jnp.float32)),
        grid_spec=pltpu.PrefetchScalarGridSpec(
            num_scalar_prefetch=0,
            grid=(n_blocks,),
            in_specs=[pl.BlockSpec((blk, IN_PAD), lambda i: (i, 0)),
                      pl.BlockSpec((1, IN_PAD), lambda i: (0, 0)),
                      pl.BlockSpec((1, IN_PAD), lambda i: (0, 0))],
            out_specs=[pl.BlockSpec((1, IN_PAD), lambda i: (0, 0)),
                       pl.BlockSpec((1, IN_PAD), lambda i: (0, 0))],
            scratch_shapes=[pltpu.VMEM((1, IN_PAD), jnp.float32),
                            pltpu.VMEM((1, IN_PAD), jnp.float32)]),
        compiler_params=pltpu.CompilerParams(dimension_semantics=("arbitrary",)),
    )(x_p, gamma_p, beta_p)

    cost = pl.CostEstimate(
        flops=2 * n_pad * (IN_PAD * HIDDEN + HIDDEN * OUT_PAD),
        transcendentals=n_pad * (HIDDEN + OUT_PAD),
        bytes_accessed=(x_p.size * 4 + w0_p.size * 2 + w2_p.size * 2
                        + b0.size * 4 + b2_p.size * 4 + 2 * IN_PAD * 4
                        + n_pad * OUT_PAD * 4),
    )

    # Pass 2: fused MLP, row blocks in parallel (megacore / v7x dual-TC friendly).
    out = pl.pallas_call(
        mlp_kernel,
        out_shape=jax.ShapeDtypeStruct((n_pad, OUT_PAD), jnp.float32),
        grid_spec=pltpu.PrefetchScalarGridSpec(
            num_scalar_prefetch=0,
            grid=(n_blocks,),
            in_specs=[pl.BlockSpec((1, IN_PAD), lambda i: (0, 0)),        # scale
                      pl.BlockSpec((1, IN_PAD), lambda i: (0, 0)),        # shift
                      pl.BlockSpec((blk, IN_PAD), lambda i: (i, 0)),      # x
                      pl.BlockSpec((IN_PAD, HIDDEN), lambda i: (0, 0)),   # w0 (bf16)
                      pl.BlockSpec((1, HIDDEN), lambda i: (0, 0)),        # b0
                      pl.BlockSpec((HIDDEN, OUT_PAD), lambda i: (0, 0)),  # w2 (bf16)
                      pl.BlockSpec((1, OUT_PAD), lambda i: (0, 0))],      # b2
            out_specs=pl.BlockSpec((blk, OUT_PAD), lambda i: (i, 0))),
        compiler_params=pltpu.CompilerParams(dimension_semantics=("parallel",)),
        cost_estimate=cost,
    )(scale, shift, x_p, w0_p, b0, w2_p, b2_p)

    return out[:n, :OUT_FEATURES]


# ---------------------------------------------------------------------------
# Parameter init (PyTorch-default-like) + one-time layout prep (pad / bf16 cast)
# ---------------------------------------------------------------------------
def init_params(key):
    k0w, k0b, k2w, k2b = jax.random.split(key, 4)
    gamma = jnp.ones((1, IN_FEATURES), jnp.float32)     # BatchNorm1d weight
    beta = jnp.zeros((1, IN_FEATURES), jnp.float32)     # BatchNorm1d bias
    lim0 = 1.0 / (IN_FEATURES ** 0.5)
    w0 = jax.random.uniform(k0w, (IN_FEATURES, HIDDEN), jnp.float32, -lim0, lim0)
    b0 = jax.random.uniform(k0b, (1, HIDDEN), jnp.float32, -lim0, lim0)
    lim2 = 1.0 / (HIDDEN ** 0.5)
    w2 = jax.random.uniform(k2w, (HIDDEN, OUT_FEATURES), jnp.float32, -lim2, lim2)
    b2 = jax.random.uniform(k2b, (1, OUT_FEATURES), jnp.float32, -lim2, lim2)
    return gamma, beta, w0, b0, w2, b2


def pad_params(gamma, beta, w0, b0, w2, b2):
    """One-time layout prep: lane-align K (26->128) and out (9->128), pre-cast weights to bf16."""
    gamma_p = jnp.zeros((1, IN_PAD), jnp.float32).at[:, :IN_FEATURES].set(gamma)
    beta_p = jnp.zeros((1, IN_PAD), jnp.float32).at[:, :IN_FEATURES].set(beta)
    w0_p = jnp.zeros((IN_PAD, HIDDEN), jnp.bfloat16).at[:IN_FEATURES, :].set(
        w0.astype(jnp.bfloat16))
    w2_p = jnp.zeros((HIDDEN, OUT_PAD), jnp.bfloat16).at[:, :OUT_FEATURES].set(
        w2.astype(jnp.bfloat16))
    b2_p = jnp.zeros((1, OUT_PAD), jnp.float32).at[:, :OUT_FEATURES].set(b2)
    return gamma_p, beta_p, w0_p, b0, w2_p, b2_p


def reference_forward(x, gamma, beta, w0, b0, w2, b2):
    """Pure-JAX f32 reference of the PyTorch forward (training-mode BN)."""
    mean = jnp.mean(x, axis=0, keepdims=True)
    var = jnp.mean((x - mean) ** 2, axis=0, keepdims=True)
    xn = (x - mean) * jax.lax.rsqrt(var + EPS) * gamma + beta
    h = xn @ w0 + b0
    h = 0.5 * h * (1.0 + jax.lax.erf(h * INV_SQRT2))
    return jax.nn.softmax(h @ w2 + b2, axis=-1)


if __name__ == "__main__":
    key = jax.random.PRNGKey(0)
    kx, kp = jax.random.split(key)
    batch = 8
    x = jax.random.normal(kx, (batch, IN_FEATURES), jnp.float32)

    params = init_params(kp)
    padded = pad_params(*params)

    out = net_forward(x, *padded)
    out = jax.block_until_ready(out)

    assert out.shape == (batch, OUT_FEATURES)
    assert bool(jnp.all(jnp.isfinite(out)))
    # Softmax rows sum to ~1 (loose tolerance: EUP approx reciprocal).
    assert jnp.allclose(jnp.sum(out, axis=-1), 1.0, atol=5e-3)
    # Match the f32 reference within bf16-matmul tolerance.
    ref = reference_forward(x, *params)
    assert jnp.max(jnp.abs(out - ref)) < 1.5e-2

    print("KERNEL_OK")
</pallas_src>

<mosaic_0001>
module attributes {stable_mosaic.version = 11 : i64} {
  func.func @bn_stats_kernel(%arg0: i32, %arg1: memref<8x128xf32, #tpu.memory_space<vmem>>, %arg2: memref<1x128xf32, #tpu.memory_space<vmem>>, %arg3: memref<1x128xf32, #tpu.memory_space<vmem>>, %arg4: memref<1x128xf32, #tpu.memory_space<vmem>>, %arg5: memref<1x128xf32, #tpu.memory_space<vmem>>, %arg6: memref<1x128xf32, #tpu.memory_space<vmem>>, %arg7: memref<1x128xf32, #tpu.memory_space<vmem>>) attributes {dimension_semantics = [#tpu.dimension_semantics<arbitrary>], iteration_bounds = array<i64: 1>, scalar_prefetch = 0 : i64, scratch_operands = 2 : i64, tpu.core_type = #tpu.core_type<tc>, window_params = [{transform_indices = @transform_0, window_bounds = array<i64: 8, 128>}, {pipeline_mode = #tpu.pipeline_mode<synchronous>, transform_indices = @transform_1, window_bounds = array<i64: 1, 128>}, {pipeline_mode = #tpu.pipeline_mode<synchronous>, transform_indices = @transform_2, window_bounds = array<i64: 1, 128>}, {pipeline_mode = #tpu.pipeline_mode<synchronous>, transform_indices = @transform_3, window_bounds = array<i64: 1, 128>}, {pipeline_mode = #tpu.pipeline_mode<synchronous>, transform_indices = @transform_4, window_bounds = array<i64: 1, 128>}]} {
    %c0_i32 = arith.constant 0 : i32
    %0 = arith.cmpi eq, %arg0, %c0_i32 : i32
    %1 = arith.extui %0 : i1 to i32
    %c0_i32_0 = arith.constant 0 : i32
    %2 = arith.cmpi ne, %1, %c0_i32_0 : i32
    scf.if %2 {
      %cst_13 = arith.constant 0.000000e+00 : f32
      %18 = vector.broadcast %cst_13 : f32 to vector<1x128xf32>
      %c0_14 = arith.constant 0 : index
      %c0_15 = arith.constant 0 : index
      %19 = vector.load %arg6[%c0_14, %c0_15] : memref<1x128xf32, #tpu.memory_space<vmem>>, vector<1x128xf32>
      tpu.vector_store %arg6[%c0_14, %c0_15], %18 {strides = array<i32>} : memref<1x128xf32, #tpu.memory_space<vmem>>, vector<1x128xf32>,
      %cst_16 = arith.constant 0.000000e+00 : f32
      %20 = vector.broadcast %cst_16 : f32 to vector<1x128xf32>
      %c0_17 = arith.constant 0 : index
      %c0_18 = arith.constant 0 : index
      %21 = vector.load %arg7[%c0_17, %c0_18] : memref<1x128xf32, #tpu.memory_space<vmem>>, vector<1x128xf32>
      tpu.vector_store %arg7[%c0_17, %c0_18], %20 {strides = array<i32>} : memref<1x128xf32, #tpu.memory_space<vmem>>, vector<1x128xf32>,
    } else {
    }
    %c0 = arith.constant 0 : index
    %c0_1 = arith.constant 0 : index
    %3 = vector.load %arg1[%c0, %c0_1] : memref<8x128xf32, #tpu.memory_space<vmem>>, vector<8x128xf32>
    %c0_2 = arith.constant 0 : index
    %c0_3 = arith.constant 0 : index
    %4 = vector.load %arg6[%c0_2, %c0_3] : memref<1x128xf32, #tpu.memory_space<vmem>>, vector<1x128xf32>
    %cst = arith.constant dense<0.000000e+00> : vector<128xf32>
    %5 = vector.multi_reduction <add>, %3, %cst [0] : vector<8x128xf32> to vector<128xf32>
    %6 = vector.shape_cast %5 : vector<128xf32> to vector<1x128xf32>
    %7 = arith.addf %4, %6 : vector<1x128xf32>
    %c0_4 = arith.constant 0 : index
    %c0_5 = arith.constant 0 : index
    %8 = vector.load %arg6[%c0_4, %c0_5] : memref<1x128xf32, #tpu.memory_space<vmem>>, vector<1x128xf32>
    tpu.vector_store %arg6[%c0_4, %c0_5], %7 {strides = array<i32>} : memref<1x128xf32, #tpu.memory_space<vmem>>, vector<1x128xf32>,
    %c0_6 = arith.constant 0 : index
    %c0_7 = arith.constant 0 : index
    %9 = vector.load %arg7[%c0_6, %c0_7] : memref<1x128xf32, #tpu.memory_space<vmem>>, vector<1x128xf32>
    %10 = arith.mulf %3, %3 : vector<8x128xf32>
    %cst_8 = arith.constant dense<0.000000e+00> : vector<128xf32>
    %11 = vector.multi_reduction <add>, %10, %cst_8 [0] : vector<8x128xf32> to vector<128xf32>
    %12 = vector.shape_cast %11 : vector<128xf32> to vector<1x128xf32>
    %13 = arith.addf %9, %12 : vector<1x128xf32>
    %c0_9 = arith.constant 0 : index
    %c0_10 = arith.constant 0 : index
    %14 = vector.load %arg7[%c0_9, %c0_10] : memref<1x128xf32, #tpu.memory_space<vmem>>, vector<1x128xf32>
    tpu.vector_store %arg7[%c0_9, %c0_10], %13 {strides = array<i32>} : memref<1x128xf32, #tpu.memory_space<vmem>>, vector<1x128xf32>,
    %c0_i32_11 = arith.constant 0 : i32
    %15 = arith.cmpi eq, %arg0, %c0_i32_11 : i32
    %16 = arith.extui %15 : i1 to i32
    %c0_i32_12 = arith.constant 0 : i32
    %17 = arith.cmpi ne, %16, %c0_i32_12 : i32
    scf.if %17 {
      %c0_13 = arith.constant 0 : index
      %c0_14 = arith.constant 0 : index
      %18 = vector.load %arg6[%c0_13, %c0_14] : memref<1x128xf32, #tpu.memory_space<vmem>>, vector<1x128xf32>
      %cst_15 = arith.constant 1.250000e-01 : f32
      %19 = vector.broadcast %cst_15 : f32 to vector<1x128xf32>
      %20 = arith.mulf %18, %19 : vector<1x128xf32>
      %c0_16 = arith.constant 0 : index
      %c0_17 = arith.constant 0 : index
      %21 = vector.load %arg7[%c0_16, %c0_17] : memref<1x128xf32, #tpu.memory_space<vmem>>, vector<1x128xf32>
      %cst_18 = arith.constant 1.250000e-01 : f32
      %22 = vector.broadcast %cst_18 : f32 to vector<1x128xf32>
      %23 = arith.mulf %21, %22 : vector<1x128xf32>
      %24 = arith.mulf %20, %20 : vector<1x128xf32>
      %25 = arith.subf %23, %24 : vector<1x128xf32>
      %cst_19 = arith.constant 9.99999974E-6 : f32
      %26 = vector.broadcast %cst_19 : f32 to vector<1x128xf32>
      %27 = arith.addf %25, %26 : vector<1x128xf32>
      %28 = math.rsqrt %27 : vector<1x128xf32>
      %c0_20 = arith.constant 0 : index
      %c0_21 = arith.constant 0 : index
      %29 = vector.load %arg2[%c0_20, %c0_21] : memref<1x128xf32, #tpu.memory_space<vmem>>, vector<1x128xf32>
      %30 = arith.mulf %28, %29 : vector<1x128xf32>
      %c0_22 = arith.constant 0 : index
      %c0_23 = arith.constant 0 : index
      %31 = vector.load %arg4[%c0_22, %c0_23] : memref<1x128xf32, #tpu.memory_space<vmem>>, vector<1x128xf32>
      tpu.vector_store %arg4[%c0_22, %c0_23], %30 {strides = array<i32>} : memref<1x128xf32, #tpu.memory_space<vmem>>, vector<1x128xf32>,
      %c0_24 = arith.constant 0 : index
      %c0_25 = arith.constant 0 : index
      %32 = vector.load %arg3[%c0_24, %c0_25] : memref<1x128xf32, #tpu.memory_space<vmem>>, vector<1x128xf32>
      %33 = arith.mulf %20, %30 : vector<1x128xf32>
      %34 = arith.subf %32, %33 : vector<1x128xf32>
      %c0_26 = arith.constant 0 : index
      %c0_27 = arith.constant 0 : index
      %35 = vector.load %arg5[%c0_26, %c0_27] : memref<1x128xf32, #tpu.memory_space<vmem>>, vector<1x128xf32>
      tpu.vector_store %arg5[%c0_26, %c0_27], %34 {strides = array<i32>} : memref<1x128xf32, #tpu.memory_space<vmem>>, vector<1x128xf32>,
    } else {
    }
    return
  }
  func.func @transform_0(%arg0: i32) -> (i32, i32) {
    %c0_i32 = arith.constant 0 : i32
    %c0_i32_0 = arith.constant 0 : i32
    return %arg0, %c0_i32 : i32, i32
  }
  func.func @transform_1(%arg0: i32) -> (i32, i32) {
    %c0_i32 = arith.constant 0 : i32
    %c0_i32_0 = arith.constant 0 : i32
    %c0_i32_1 = arith.constant 0 : i32
    return %c0_i32, %c0_i32_0 : i32, i32
  }
  func.func @transform_2(%arg0: i32) -> (i32, i32) {
    %c0_i32 = arith.constant 0 : i32
    %c0_i32_0 = arith.constant 0 : i32
    %c0_i32_1 = arith.constant 0 : i32
    return %c0_i32, %c0_i32_0 : i32, i32
  }
  func.func @transform_3(%arg0: i32) -> (i32, i32) {
    %c0_i32 = arith.constant 0 : i32
    %c0_i32_0 = arith.constant 0 : i32
    %c0_i32_1 = arith.constant 0 : i32
    return %c0_i32, %c0_i32_0 : i32, i32
  }
  func.func @transform_4(%arg0: i32) -> (i32, i32) {
    %c0_i32 = arith.constant 0 : i32
    %c0_i32_0 = arith.constant 0 : i32
    %c0_i32_1 = arith.constant 0 : i32
    return %c0_i32, %c0_i32_0 : i32, i32
  }
}

</mosaic_0001>

<llo_original>
// kernel: tpu_custom_call.1
$region0: #{tpu_custom_call.1}
  #allocation0 [shape = 'u32[]', space=smem, size = 0x4, offset = 0x4, fixed_abs, tag = 'smem constant byte address 0x4 - core index']
  #allocation1 [shape = 'u32[72,128]{1,0:T(1,128)}', space=vmem, size = 0x9000, scoped, tag = 'internal scratch']
  #allocation2 [shape = 'f32[1,128]{1,0:T(1,128)}', space=vmem, size = 0x200, scoped, tag = 'scratch operand']
  #allocation3 [shape = 'f32[1,128]{1,0:T(1,128)}', space=vmem, size = 0x200, scoped, tag = 'scratch operand']
  %s0 = inlined_call_operand.hbm [shape: f32[8,128], index: 0, kind: input, shape index: {}]
  %s1 = inlined_call_operand.hbm [shape: f32[1,128], index: 1, kind: input, shape index: {}]
  %s2 = inlined_call_operand.vmem [shape: f32[1,128], index: 2, kind: input, shape index: {}]
  %s3 = inlined_call_operand.hbm [shape: f32[1,128], index: 3, kind: output, shape index: {0}]
  %s4 = inlined_call_operand.hbm [shape: f32[1,128], index: 4, kind: output, shape index: {1}]
  %5 = xla_tuple %s3, %s4
  %s6 = sld [smem:[#allocation0]]
  $region46: #{tpu_custom_call.1} parent=0
    _
  %s8 = ssub.s32 1, %s6
  %s9 = scalar_select 0, %s8, %s6
  $region1: #{tpu_custom_call.1} parent=0
    #allocation4 [shape = 'u8[4096]{0}', space=vmem, size = 0x1000, scoped, tag = 'input window, operand 0, single buffered']
    #allocation5 [shape = 's32[1]{0}', space=sflag, size = 0x4, scoped, tag = 'scoped memory for tpu_custom_call.1']
    #allocation6 [shape = 's32[1]{0}', space=sflag, size = 0x4, scoped, tag = 'scoped memory for tpu_custom_call.1']
    #allocation7 [shape = 'u8[512]{0}', space=vmem, size = 0x400, scoped, tag = 'input window, operand 1, single buffered']
    #allocation8 [shape = 's32[1]{0}', space=sflag, size = 0x4, scoped, tag = 'scoped memory for tpu_custom_call.1']
    #allocation9 [shape = 'u8[512]{0}', space=vmem, size = 0x400, scoped, tag = 'output window, operand 0, single buffered']
    #allocation10 [shape = 'u8[512]{0}', space=vmem, size = 0x400, scoped, tag = 'output window, operand 1, single buffered']
    #allocation11 [shape = 's32[1]{0}', space=sflag, size = 0x4, scoped, tag = 'scoped memory for tpu_custom_call.1']
    %10 = vsyncpa [#allocation5], 0
    %11 = vsyncpa [#allocation8], 0
    %12 = vsyncpa [#allocation6], 0
    %13 = vsyncpa [#allocation11], 0
    // Predicated region
    $region2: #{tpu_custom_call.1} parent=1 // pred_check
      _
    $region3: #{tpu_custom_call.1} parent=1 // pred_check_branch
      %15 = sbr.rel (0) target = $region5
    $region4: #{tpu_custom_call.1} parent=1 // pred_region
      %17 = vsyncadd [#allocation5], 0
      %s19 = sshll.u32 %s0, 4
      %s20 = int_to_ptr.hbm [resolvable:$true] %s19
      %s21 = sshll.u32 [#allocation4], 4
      %s22 = int_to_ptr.vmem [resolvable:$true] %s21
      %24 = dma.hbm_to_vmem [thread:$0]  %s20, 128, %s22, [#allocation5]
    $region5: #{tpu_custom_call.1} parent=1 // pred_fallthru
      _
    // Predicated region
    $region6: #{tpu_custom_call.1} parent=1 // pred_check
      _
    $region7: #{tpu_custom_call.1} parent=1 // pred_check_branch
      %26 = sbr.rel (0) target = $region9
    $region8: #{tpu_custom_call.1} parent=1 // pred_region
      %28 = vsyncadd [#allocation8], 0
      %s30 = sshll.u32 %s1, 4
      %s31 = int_to_ptr.hbm [resolvable:$true] %s30
      %s32 = sshll.u32 [#allocation7], 4
      %s33 = int_to_ptr.vmem [resolvable:$true] %s32
      %35 = dma.hbm_to_vmem [thread:$0]  %s31, 16, %s33, [#allocation8]
    $region9: #{tpu_custom_call.1} parent=1 // pred_fallthru
      _
    // Predicated region
    $region10: #{tpu_custom_call.1} parent=1 // pred_check
      _
    $region11: #{tpu_custom_call.1} parent=1 // pred_check_branch
      %37 = sbr.rel (0) target = $region13
    $region12: #{tpu_custom_call.1} parent=1 // pred_region
      _
    $region13: #{tpu_custom_call.1} parent=1 // pred_fallthru
      _
    // Predicated region
    $region14: #{tpu_custom_call.1} parent=1 // pred_check
      _
    $region15: #{tpu_custom_call.1} parent=1 // pred_check_branch
      %39 = sbr.rel (0) target = $region17
    $region16: #{tpu_custom_call.1} parent=1 // pred_region
      %41 = dma.done [#allocation5], 128
    $region17: #{tpu_custom_call.1} parent=1 // pred_fallthru
      _
    // Predicated region
    $region18: #{tpu_custom_call.1} parent=1 // pred_check
      _
    $region19: #{tpu_custom_call.1} parent=1 // pred_check_branch
      %43 = sbr.rel (0) target = $region21
    $region20: #{tpu_custom_call.1} parent=1 // pred_region
      %45 = dma.done [#allocation8], 16
    $region21: #{tpu_custom_call.1} parent=1 // pred_fallthru
      _
    %p46 = scmp.eq.s32.totalorder 0, 0
    // Predicated region
    $region22: #{tpu_custom_call.1} parent=1 // pred_check
      %p47 = pneg %p46
    $region23: #{tpu_custom_call.1} parent=1 // pred_check_branch
      %49 = sbr.rel (%p47) target = $region25
    $region24: #{tpu_custom_call.1} parent=1 // pred_region
      %50 = vst [vmem:[#allocation2] sm:$0x1] 0.0
      %51 = vst [vmem:[#allocation3] sm:$0x1] 0.0
    $region25: #{tpu_custom_call.1} parent=1 // pred_fallthru
      _
    %v52 = vld [vmem:[#allocation4] sm:$0xff]
    %v53 = vld [vmem:[#allocation2] sm:$0x1]
    %v54 = vrot.slane %v52, 4
    %v55 = vadd.f32 %v52, %v54
    %v56 = vrot.slane %v55, 2
    %v57 = vadd.f32 %v55, %v56
    %v58 = vrot.slane %v57, 1
    %v59 = vadd.f32 %v57, %v58
    %v60 = vadd.f32 %v53, %v59
    %61 = vst [vmem:[#allocation2] sm:$0x1] %v60
    %v62 = vld [vmem:[#allocation3] sm:$0x1]
    %v63 = vmul.f32 %v52, %v52
    %v64 = vrot.slane %v63, 4
    %v65 = vadd.f32 %v63, %v64
    %v66 = vrot.slane %v65, 2
    %v67 = vadd.f32 %v65, %v66
    %v68 = vrot.slane %v67, 1
    %v69 = vadd.f32 %v67, %v68
    %v70 = vadd.f32 %v62, %v69
    %71 = vst [vmem:[#allocation3] sm:$0x1] %v70
    // Predicated region
    $region26: #{tpu_custom_call.1} parent=1 // pred_check
      %p72 = pneg %p46
    $region27: #{tpu_custom_call.1} parent=1 // pred_check_branch
      %74 = sbr.rel (%p72) target = $region29
    $region28: #{tpu_custom_call.1} parent=1 // pred_region
      %v75 = vld [vmem:[#allocation2] sm:$0x1]
      %v76 = vmul.f32 %v75, 0.125
      %v77 = vld [vmem:[#allocation3] sm:$0x1]
      %v78 = vmul.f32 %v77, 0.125
      %v79 = vmul.f32 %v76, %v76
      %v80 = vsub.f32 %v78, %v79
      %v81 = vadd.f32 %v80, 1e-05
      %v82 = vrsqrt.pop %v81
      %v83 = vmul.f32 %v82, %v81
      %v84 = vmul.f32 %v83, %v82
      %v85 = vmul.f32 0.5, %v84
      %v86 = vsub.f32 1.5, %v85
      %v87 = vmul.f32 %v82, %v86
      %vm88 = vweird.f32 %v81
      %vm89 = vweird.f32 %v82
      %vm90 = vmor %vm88, %vm89
      %v91 = vsel %vm90, %v82, %v87
      %v92 = vld [vmem:[#allocation7] sm:$0x1]
      %v93 = vmul.f32 %v91, %v92
      %94 = vst [vmem:[#allocation9] sm:$0x1] %v93
      %v95 = vld [vmem:[%s2] sm:$0x1]
      %v96 = vmul.f32 %v76, %v93
      %v97 = vsub.f32 %v95, %v96
      %98 = vst [vmem:[#allocation10] sm:$0x1] %v97
    $region29: #{tpu_custom_call.1} parent=1 // pred_fallthru
      _
    // Predicated region
    $region30: #{tpu_custom_call.1} parent=1 // pred_check
      _
    $region31: #{tpu_custom_call.1} parent=1 // pred_check_branch
      %100 = sbr.rel (0) target = $region33
    $region32: #{tpu_custom_call.1} parent=1 // pred_region
      %102 = vsyncadd [#allocation6], 0
      %s104 = sshll.u32 [#allocation9], 4
      %s105 = int_to_ptr.vmem [resolvable:$true] %s104
      %s106 = sshll.u32 %s3, 4
      %s107 = int_to_ptr.hbm [resolvable:$true] %s106
      %109 = dma.vmem_to_hbm [thread:$0]  %s105, 16, %s107, [#allocation6]
    $region33: #{tpu_custom_call.1} parent=1 // pred_fallthru
      _
    // Predicated region
    $region34: #{tpu_custom_call.1} parent=1 // pred_check
      _
    $region35: #{tpu_custom_call.1} parent=1 // pred_check_branch
      %111 = sbr.rel (0) target = $region37
    $region36: #{tpu_custom_call.1} parent=1 // pred_region
      %113 = vsyncadd [#allocation11], 0
      %s115 = sshll.u32 [#allocation10], 4
      %s116 = int_to_ptr.vmem [resolvable:$true] %s115
      %s117 = sshll.u32 %s4, 4
      %s118 = int_to_ptr.hbm [resolvable:$true] %s117
      %120 = dma.vmem_to_hbm [thread:$0]  %s116, 16, %s118, [#allocation11]
    $region37: #{tpu_custom_call.1} parent=1 // pred_fallthru
      _
    // Predicated region
    $region38: #{tpu_custom_call.1} parent=1 // pred_check
      _
    $region39: #{tpu_custom_call.1} parent=1 // pred_check_branch
      %122 = sbr.rel (0) target = $region41
    $region40: #{tpu_custom_call.1} parent=1 // pred_region
      %124 = dma.done [#allocation6], 16
    $region41: #{tpu_custom_call.1} parent=1 // pred_fallthru
      _
    // Predicated region
    $region42: #{tpu_custom_call.1} parent=1 // pred_check
      _
    $region43: #{tpu_custom_call.1} parent=1 // pred_check_branch
      %126 = sbr.rel (0) target = $region45
    $region44: #{tpu_custom_call.1} parent=1 // pred_region
      %128 = dma.done [#allocation11], 16
    $region45: #{tpu_custom_call.1} parent=1 // pred_fallthru
      _
    %129 = vsyncpa [#allocation5], 1
    %130 = vsyncpa [#allocation8], 1
    %131 = vsyncpa [#allocation6], 1
    %132 = vsyncpa [#allocation11], 1

</llo_original>
